<compile_context>
chip_gen: v6e
topology: v6e:2x2x1
jax: 0.10.0
libtpu: 0.0.40
codegen_flags: <defaults>
</compile_context>

<pallas_src>
import functools

import jax
import jax.numpy as jnp
import numpy as np
from jax import lax
from jax.experimental import pallas as pl
from jax.experimental.pallas import tpu as pltpu


def _round_up(v, m):
    return (v + m - 1) // m * m


# ----------------------------------------------------------------------------
# Pallas kernel: processes one block of TE edges per grid step.
# ----------------------------------------------------------------------------
def triconv_kernel(feat_ref, src_ref, tgt_ref, w1_ref, b1_ref, w2_ref, b2_ref,
                   out_ref):
    # Output is resident across the (sequential, "arbitrary") edge axis:
    # zero it on the first grid step only.
    @pl.when(pl.program_id(0) == 0)
    def _():
        out_ref[...] = jnp.zeros_like(out_ref)

    feat = feat_ref[...]            # [N_pad, Din_pad]  (geom ++ x, zero-padded)
    src = src_ref[...]              # [TE, 1] int32  (-1 marks padding edges)
    tgt = tgt_ref[...]              # [TE, 1] int32

    n_pad = feat.shape[0]
    te = src.shape[0]

    col = lax.broadcasted_iota(jnp.int32, (te, n_pad), 1)
    oh_src = (src == col).astype(feat.dtype)       # [TE, N_pad] one-hot gather
    oh_tgt = (tgt == col).astype(feat.dtype)

    # Fused gather of (feat[src] - feat[tgt]) via a single MXU matmul:
    # selector rows are exactly {-1, 0, +1} so this is exact in f32.
    # Padding edges (src = tgt = -1) produce all-zero selector rows.
    diff = jnp.dot(oh_src - oh_tgt, feat,
                   preferred_element_type=jnp.float32)   # [TE, Din_pad]

    # MLP: Linear -> ReLU -> Linear  (all dims padded to 128 lanes)
    h = jnp.dot(diff, w1_ref[...], preferred_element_type=jnp.float32)
    h = jnp.maximum(h + b1_ref[...], 0.0)
    y = jnp.dot(h, w2_ref[...], preferred_element_type=jnp.float32) + b2_ref[...]

    # scatter_add onto src faces: contract the TE axis directly on the MXU
    # (oh_src^T @ y) without materializing a transposed [N_pad, TE] matrix.
    # Padding edges have all-zero one-hot rows, so they contribute nothing.
    out_ref[...] += lax.dot_general(
        oh_src, y,
        dimension_numbers=(((0,), (0,)), ((), ())),
        preferred_element_type=jnp.float32)


# ----------------------------------------------------------------------------
# Wrapper
# ----------------------------------------------------------------------------
@functools.partial(jax.jit, static_argnames=("edge_block",))
def triconv_forward(x, points, triangles, triangle_edges, params,
                    edge_block=128):
    """x: [N, H] float32, points: [P, 3], triangles: [N, 3] int32,
    triangle_edges: [2, E] int32."""
    w1, b1, w2, b2 = params          # w1: [H+9, H], b1: [H], w2: [H, H], b2: [H]
    n_faces, hidden = x.shape
    d_in = hidden + 9

    # ---- geometry (gather glue, plain JAX) ----
    tp = points[triangles].astype(x.dtype)                 # [N, 3, 3]
    e_ij = tp[:, 0] - tp[:, 1]
    e_ik = tp[:, 0] - tp[:, 2]
    e_jk = tp[:, 1] - tp[:, 2]
    ev = jnp.stack([e_ij, e_ik, e_jk], axis=1)             # [N, 3, 3]
    t_max = jnp.max(ev, axis=1)
    t_min = jnp.min(ev, axis=1)
    bary = jnp.mean(tp, axis=1)
    geom = jnp.concatenate([t_min, t_max, bary], axis=1).astype(x.dtype)  # [N, 9]
    feat = jnp.concatenate([geom, x], axis=1)              # [N, H+9]

    # ---- padding for TPU-friendly tiles ----
    n_pad = _round_up(n_faces, 8)
    d_pad = _round_up(d_in, 128)
    h_pad = _round_up(hidden, 128)      # lane-dense MLP / output columns
    feat_p = jnp.zeros((n_pad, d_pad), x.dtype).at[:n_faces, :d_in].set(feat)
    w1_p = jnp.zeros((d_pad, h_pad), x.dtype).at[:d_in, :hidden].set(
        w1.astype(x.dtype))
    b1_p = jnp.zeros((1, h_pad), x.dtype).at[0, :hidden].set(b1.astype(x.dtype))
    w2_p = jnp.zeros((h_pad, h_pad), x.dtype).at[:hidden, :hidden].set(
        w2.astype(x.dtype))
    b2_p = jnp.zeros((1, h_pad), x.dtype).at[0, :hidden].set(b2.astype(x.dtype))

    num_edges = triangle_edges.shape[1]
    e_pad = _round_up(max(num_edges, 1), edge_block)
    src = jnp.full((e_pad, 1), -1, jnp.int32).at[:num_edges, 0].set(
        triangle_edges[0].astype(jnp.int32))
    tgt = jnp.full((e_pad, 1), -1, jnp.int32).at[:num_edges, 0].set(
        triangle_edges[1].astype(jnp.int32))

    # ---- explicit VMEM budget (grid-invariant operands + per-step scratch) --
    f32 = 4
    resident = (n_pad * d_pad + n_pad * h_pad + d_pad * h_pad
                + h_pad * h_pad + 2 * h_pad + 2 * edge_block) * f32
    per_step = (3 * edge_block * n_pad            # one-hot selectors
                + 3 * edge_block * max(d_pad, h_pad)) * f32  # diff/h/y
    needed = 2 * resident + per_step              # default double-buffering
    vmem_limit = int(min(max(2 * needed, 32 << 20), 64 << 20))

    grid = (e_pad // edge_block,)
    out = pl.pallas_call(
        triconv_kernel,
        out_shape=jax.ShapeDtypeStruct((n_pad, h_pad), jnp.float32),
        grid=grid,
        in_specs=[
            pl.BlockSpec((n_pad, d_pad), lambda e: (0, 0)),       # feat
            pl.BlockSpec((edge_block, 1), lambda e: (e, 0)),      # src idx
            pl.BlockSpec((edge_block, 1), lambda e: (e, 0)),      # tgt idx
            pl.BlockSpec((d_pad, h_pad), lambda e: (0, 0)),       # w1
            pl.BlockSpec((1, h_pad), lambda e: (0, 0)),           # b1
            pl.BlockSpec((h_pad, h_pad), lambda e: (0, 0)),       # w2
            pl.BlockSpec((1, h_pad), lambda e: (0, 0)),           # b2
        ],
        out_specs=pl.BlockSpec((n_pad, h_pad), lambda e: (0, 0)),
        compiler_params=pltpu.CompilerParams(
            dimension_semantics=("arbitrary",),
            vmem_limit_bytes=vmem_limit),
    )(feat_p, src, tgt, w1_p, b1_p, w2_p, b2_p)

    return out[:n_faces, :hidden].astype(x.dtype)


# ----------------------------------------------------------------------------
# Pure-JAX reference (mirrors the PyTorch forward exactly)
# ----------------------------------------------------------------------------
def triconv_reference(x, points, triangles, triangle_edges, params):
    w1, b1, w2, b2 = params
    tp = points[triangles].astype(x.dtype)
    e_ij = tp[:, 0] - tp[:, 1]
    e_ik = tp[:, 0] - tp[:, 2]
    e_jk = tp[:, 1] - tp[:, 2]
    ev = jnp.stack([e_ij, e_ik, e_jk], axis=1)
    t_max = jnp.max(ev, axis=1)
    t_min = jnp.min(ev, axis=1)
    bary = jnp.mean(tp, axis=1)
    src = triangle_edges[0]
    tgt = triangle_edges[1]
    r_n_k = jnp.concatenate(
        [t_min[src] - t_min[tgt], t_max[src] - t_max[tgt], bary[src] - bary[tgt]],
        axis=1).astype(x.dtype)
    feature_diff = x[src] - x[tgt]
    mlp_in = jnp.concatenate([r_n_k, feature_diff], axis=1)
    h = jnp.maximum(mlp_in @ w1 + b1, 0.0)
    y = h @ w2 + b2
    return jnp.zeros_like(x).at[src].add(y)


# ----------------------------------------------------------------------------
# Deterministic parameter init (matches nn.Linear shapes; synthetic values)
# ----------------------------------------------------------------------------
def init_params(key, hidden_dim):
    d_in = hidden_dim + 9
    k1, k2, k3, k4 = jax.random.split(key, 4)
    lim1 = 1.0 / np.sqrt(d_in)
    lim2 = 1.0 / np.sqrt(hidden_dim)
    w1 = jax.random.uniform(k1, (d_in, hidden_dim), jnp.float32, -lim1, lim1)
    b1 = jax.random.uniform(k2, (hidden_dim,), jnp.float32, -lim1, lim1)
    w2 = jax.random.uniform(k3, (hidden_dim, hidden_dim), jnp.float32, -lim2, lim2)
    b2 = jax.random.uniform(k4, (hidden_dim,), jnp.float32, -lim2, lim2)
    return (w1, b1, w2, b2)


if __name__ == "__main__":
    hidden = 32
    n_faces = 64
    n_points = 40
    n_edges = 100

    key = jax.random.PRNGKey(0)
    kx, kp, kt, ke, kw = jax.random.split(key, 5)

    x = jax.random.normal(kx, (n_faces, hidden), jnp.float32)
    points = jax.random.normal(kp, (n_points, 3), jnp.float32)
    triangles = jax.random.randint(kt, (n_faces, 3), 0, n_points, jnp.int32)
    triangle_edges = jax.random.randint(ke, (2, n_edges), 0, n_faces, jnp.int32)
    params = init_params(kw, hidden)

    out = triconv_forward(x, points, triangles, triangle_edges, params)
    out = jax.block_until_ready(out)

    ref = jax.block_until_ready(
        triconv_reference(x, points, triangles, triangle_edges, params))

    if not np.allclose(np.asarray(out), np.asarray(ref), rtol=1e-4, atol=1e-4):
        raise AssertionError("Pallas TriConv output mismatch vs reference")

    print("KERNEL_OK")
</pallas_src>

<mosaic_0001>
module attributes {stable_mosaic.version = 11 : i64} {
  func.func @triconv_kernel(%arg0: i32, %arg1: memref<64x128xf32, #tpu.memory_space<vmem>>, %arg2: memref<128x1xi32, #tpu.memory_space<vmem>>, %arg3: memref<128x1xi32, #tpu.memory_space<vmem>>, %arg4: memref<128x128xf32, #tpu.memory_space<vmem>>, %arg5: memref<1x128xf32, #tpu.memory_space<vmem>>, %arg6: memref<128x128xf32, #tpu.memory_space<vmem>>, %arg7: memref<1x128xf32, #tpu.memory_space<vmem>>, %arg8: memref<64x128xf32, #tpu.memory_space<vmem>>) attributes {dimension_semantics = [#tpu.dimension_semantics<arbitrary>], iteration_bounds = array<i64: 1>, scalar_prefetch = 0 : i64, scratch_operands = 0 : i64, tpu.core_type = #tpu.core_type<tc>, window_params = [{pipeline_mode = #tpu.pipeline_mode<synchronous>, transform_indices = @transform_0, window_bounds = array<i64: 64, 128>}, {transform_indices = @transform_1, window_bounds = array<i64: 128, 1>}, {transform_indices = @transform_2, window_bounds = array<i64: 128, 1>}, {pipeline_mode = #tpu.pipeline_mode<synchronous>, transform_indices = @transform_3, window_bounds = array<i64: 128, 128>}, {pipeline_mode = #tpu.pipeline_mode<synchronous>, transform_indices = @transform_4, window_bounds = array<i64: 1, 128>}, {pipeline_mode = #tpu.pipeline_mode<synchronous>, transform_indices = @transform_5, window_bounds = array<i64: 128, 128>}, {pipeline_mode = #tpu.pipeline_mode<synchronous>, transform_indices = @transform_6, window_bounds = array<i64: 1, 128>}, {pipeline_mode = #tpu.pipeline_mode<synchronous>, transform_indices = @transform_7, window_bounds = array<i64: 64, 128>}]} {
    %c0_i32 = arith.constant 0 : i32
    %0 = arith.cmpi eq, %arg0, %c0_i32 : i32
    %1 = arith.extui %0 : i1 to i32
    %c0_i32_0 = arith.constant 0 : i32
    %2 = arith.cmpi ne, %1, %c0_i32_0 : i32
    scf.if %2 {
      %cst_22 = arith.constant 0.000000e+00 : f32
      %33 = vector.broadcast %cst_22 : f32 to vector<64x128xf32>
      %c0_23 = arith.constant 0 : index
      %c0_24 = arith.constant 0 : index
      %34 = vector.load %arg8[%c0_23, %c0_24] : memref<64x128xf32, #tpu.memory_space<vmem>>, vector<64x128xf32>
      tpu.vector_store %arg8[%c0_23, %c0_24], %33 {strides = array<i32>} : memref<64x128xf32, #tpu.memory_space<vmem>>, vector<64x128xf32>,
    } else {
    }
    %c0 = arith.constant 0 : index
    %c0_1 = arith.constant 0 : index
    %3 = vector.load %arg1[%c0, %c0_1] : memref<64x128xf32, #tpu.memory_space<vmem>>, vector<64x128xf32>
    %c0_2 = arith.constant 0 : index
    %c0_3 = arith.constant 0 : index
    %4 = vector.load %arg2[%c0_2, %c0_3] : memref<128x1xi32, #tpu.memory_space<vmem>>, vector<128x1xi32>
    %c0_4 = arith.constant 0 : index
    %c0_5 = arith.constant 0 : index
    %5 = vector.load %arg3[%c0_4, %c0_5] : memref<128x1xi32, #tpu.memory_space<vmem>>, vector<128x1xi32>
    %6 = tpu.iota {dimensions = array<i32: 1>} : vector<128x64xi32>
    %7 = vector.broadcast %4 : vector<128x1xi32> to vector<128x64xi32>
    %8 = arith.cmpi eq, %7, %6 : vector<128x64xi32>
    %9 = arith.extui %8 : vector<128x64xi1> to vector<128x64xi32>
    %10 = arith.sitofp %9 : vector<128x64xi32> to vector<128x64xf32>
    %11 = vector.broadcast %5 : vector<128x1xi32> to vector<128x64xi32>
    %12 = arith.cmpi eq, %11, %6 : vector<128x64xi32>
    %13 = arith.extui %12 : vector<128x64xi1> to vector<128x64xi32>
    %14 = arith.sitofp %13 : vector<128x64xi32> to vector<128x64xf32>
    %15 = arith.subf %10, %14 : vector<128x64xf32>
    %cst = arith.constant dense<0.000000e+00> : vector<128x128xf32>
    %16 = tpu.matmul %15, %3, %cst {dimension_numbers = #tpu.dot_dimension_numbers<[1], [0], [0], [1], [0, 0, 1, 1], [], []>} : vector<128x64xf32>, vector<64x128xf32>, vector<128x128xf32> -> vector<128x128xf32>
    %c0_6 = arith.constant 0 : index
    %c0_7 = arith.constant 0 : index
    %17 = vector.load %arg4[%c0_6, %c0_7] : memref<128x128xf32, #tpu.memory_space<vmem>>, vector<128x128xf32>
    %cst_8 = arith.constant dense<0.000000e+00> : vector<128x128xf32>
    %18 = tpu.matmul %16, %17, %cst_8 {dimension_numbers = #tpu.dot_dimension_numbers<[1], [0], [0], [1], [0, 0, 1, 1], [], []>} : vector<128x128xf32>, vector<128x128xf32>, vector<128x128xf32> -> vector<128x128xf32>
    %c0_9 = arith.constant 0 : index
    %c0_10 = arith.constant 0 : index
    %19 = vector.load %arg5[%c0_9, %c0_10] : memref<1x128xf32, #tpu.memory_space<vmem>>, vector<1x128xf32>
    %20 = vector.broadcast %19 : vector<1x128xf32> to vector<128x128xf32>
    %21 = arith.addf %18, %20 : vector<128x128xf32>
    %cst_11 = arith.constant 0.000000e+00 : f32
    %22 = vector.broadcast %cst_11 : f32 to vector<128x128xf32>
    %23 = arith.maximumf %21, %22 : vector<128x128xf32>
    %c0_12 = arith.constant 0 : index
    %c0_13 = arith.constant 0 : index
    %24 = vector.load %arg6[%c0_12, %c0_13] : memref<128x128xf32, #tpu.memory_space<vmem>>, vector<128x128xf32>
    %cst_14 = arith.constant dense<0.000000e+00> : vector<128x128xf32>
    %25 = tpu.matmul %23, %24, %cst_14 {dimension_numbers = #tpu.dot_dimension_numbers<[1], [0], [0], [1], [0, 0, 1, 1], [], []>} : vector<128x128xf32>, vector<128x128xf32>, vector<128x128xf32> -> vector<128x128xf32>
    %c0_15 = arith.constant 0 : index
    %c0_16 = arith.constant 0 : index
    %26 = vector.load %arg7[%c0_15, %c0_16] : memref<1x128xf32, #tpu.memory_space<vmem>>, vector<1x128xf32>
    %27 = vector.broadcast %26 : vector<1x128xf32> to vector<128x128xf32>
    %28 = arith.addf %25, %27 : vector<128x128xf32>
    %c0_17 = arith.constant 0 : index
    %c0_18 = arith.constant 0 : index
    %29 = vector.load %arg8[%c0_17, %c0_18] : memref<64x128xf32, #tpu.memory_space<vmem>>, vector<64x128xf32>
    %cst_19 = arith.constant dense<0.000000e+00> : vector<64x128xf32>
    %30 = tpu.matmul %10, %28, %cst_19 {dimension_numbers = #tpu.dot_dimension_numbers<[0], [0], [1], [1], [0, 1, 1, 1], [], []>} : vector<128x64xf32>, vector<128x128xf32>, vector<64x128xf32> -> vector<64x128xf32>
    %31 = arith.addf %29, %30 : vector<64x128xf32>
    %c0_20 = arith.constant 0 : index
    %c0_21 = arith.constant 0 : index
    %32 = vector.load %arg8[%c0_20, %c0_21] : memref<64x128xf32, #tpu.memory_space<vmem>>, vector<64x128xf32>
    tpu.vector_store %arg8[%c0_20, %c0_21], %31 {strides = array<i32>} : memref<64x128xf32, #tpu.memory_space<vmem>>, vector<64x128xf32>,
    return
  }
  func.func @transform_0(%arg0: i32) -> (i32, i32) {
    %c0_i32 = arith.constant 0 : i32
    %c0_i32_0 = arith.constant 0 : i32
    %c0_i32_1 = arith.constant 0 : i32
    return %c0_i32, %c0_i32_0 : i32, i32
  }
  func.func @transform_1(%arg0: i32) -> (i32, i32) {
    %c0_i32 = arith.constant 0 : i32
    %c0_i32_0 = arith.constant 0 : i32
    return %arg0, %c0_i32 : i32, i32
  }
  func.func @transform_2(%arg0: i32) -> (i32, i32) {
    %c0_i32 = arith.constant 0 : i32
    %c0_i32_0 = arith.constant 0 : i32
    return %arg0, %c0_i32 : i32, i32
  }
  func.func @transform_3(%arg0: i32) -> (i32, i32) {
    %c0_i32 = arith.constant 0 : i32
    %c0_i32_0 = arith.constant 0 : i32
    %c0_i32_1 = arith.constant 0 : i32
    return %c0_i32, %c0_i32_0 : i32, i32
  }
  func.func @transform_4(%arg0: i32) -> (i32, i32) {
    %c0_i32 = arith.constant 0 : i32
    %c0_i32_0 = arith.constant 0 : i32
    %c0_i32_1 = arith.constant 0 : i32
    return %c0_i32, %c0_i32_0 : i32, i32
  }
  func.func @transform_5(%arg0: i32) -> (i32, i32) {
    %c0_i32 = arith.constant 0 : i32
    %c0_i32_0 = arith.constant 0 : i32
    %c0_i32_1 = arith.constant 0 : i32
    return %c0_i32, %c0_i32_0 : i32, i32
  }
  func.func @transform_6(%arg0: i32) -> (i32, i32) {
    %c0_i32 = arith.constant 0 : i32
    %c0_i32_0 = arith.constant 0 : i32
    %c0_i32_1 = arith.constant 0 : i32
    return %c0_i32, %c0_i32_0 : i32, i32
  }
  func.func @transform_7(%arg0: i32) -> (i32, i32) {
    %c0_i32 = arith.constant 0 : i32
    %c0_i32_0 = arith.constant 0 : i32
    %c0_i32_1 = arith.constant 0 : i32
    return %c0_i32, %c0_i32_0 : i32, i32
  }
}

</mosaic_0001>

<llo_original>
// kernel: triconv_forward.1
$region0: #{triconv_forward.1}
  #allocation0 [shape = 'u32[]', space=smem, size = 0x4, offset = 0x4, fixed_abs, tag = 'smem constant byte address 0x4 - core index']
  #allocation1 [shape = 'u32[144,128]{1,0:T(1,128)}', space=vmem, size = 0x12000, scoped, tag = 'internal scratch']
  %s0 = inlined_call_operand.vmem [shape: f32[64,128], index: 0, kind: input, shape index: {}]
  %s1 = inlined_call_operand.vmem [shape: s32[128,1], index: 1, kind: input, shape index: {}]
  %s2 = inlined_call_operand.vmem [shape: s32[128,1], index: 2, kind: input, shape index: {}]
  %s3 = inlined_call_operand.vmem [shape: f32[128,128], index: 3, kind: input, shape index: {}]
  %s4 = inlined_call_operand.vmem [shape: f32[1,128], index: 4, kind: input, shape index: {}]
  %s5 = inlined_call_operand.vmem [shape: f32[128,128], index: 5, kind: input, shape index: {}]
  %s6 = inlined_call_operand.vmem [shape: f32[1,128], index: 6, kind: input, shape index: {}]
  %s7 = inlined_call_operand.vmem [shape: f32[64,128], index: 7, kind: output, shape index: {}]
  %s8 = sld [smem:[#allocation0]]
  $region42: #{triconv_forward.1} parent=0
    _
  %s10 = ssub.s32 1, %s8
  %s11 = scalar_select 0, %s10, %s8
  // Predicated region
  $region2: #{triconv_forward.1} parent=0 // pred_check
    _
  $region3: #{triconv_forward.1} parent=0 // pred_check_branch
    %13 = sbr.rel (0) target = $region5
  $region4: #{triconv_forward.1} parent=0 // pred_region
    _
  $region5: #{triconv_forward.1} parent=0 // pred_fallthru
    _
  // Predicated region
  $region6: #{triconv_forward.1} parent=0 // pred_check
    _
  $region7: #{triconv_forward.1} parent=0 // pred_check_branch
    %15 = sbr.rel (0) target = $region9
  $region8: #{triconv_forward.1} parent=0 // pred_region
    _
  $region9: #{triconv_forward.1} parent=0 // pred_fallthru
    _
  // Predicated region
  $region10: #{triconv_forward.1} parent=0 // pred_check
    _
  $region11: #{triconv_forward.1} parent=0 // pred_check_branch
    %17 = sbr.rel (0) target = $region13
  $region12: #{triconv_forward.1} parent=0 // pred_region
    _
  $region13: #{triconv_forward.1} parent=0 // pred_fallthru
    _
  // Predicated region
  $region14: #{triconv_forward.1} parent=0 // pred_check
    _
  $region15: #{triconv_forward.1} parent=0 // pred_check_branch
    %19 = sbr.rel (0) target = $region17
  $region16: #{triconv_forward.1} parent=0 // pred_region
    _
  $region17: #{triconv_forward.1} parent=0 // pred_fallthru
    _
  // Predicated region
  $region18: #{triconv_forward.1} parent=0 // pred_check
    _
  $region19: #{triconv_forward.1} parent=0 // pred_check_branch
    %21 = sbr.rel (0) target = $region21
  $region20: #{triconv_forward.1} parent=0 // pred_region
    _
  $region21: #{triconv_forward.1} parent=0 // pred_fallthru
    _
  // Predicated region
  $region22: #{triconv_forward.1} parent=0 // pred_check
    _
  $region23: #{triconv_forward.1} parent=0 // pred_check_branch
    %23 = sbr.rel (0) target = $region25
  $region24: #{triconv_forward.1} parent=0 // pred_region
    _
  $region25: #{triconv_forward.1} parent=0 // pred_fallthru
    _
  // Predicated region
  $region26: #{triconv_forward.1} parent=0 // pred_check
    _
  $region27: #{triconv_forward.1} parent=0 // pred_check_branch
    %25 = sbr.rel (0) target = $region29
  $region28: #{triconv_forward.1} parent=0 // pred_region
    _
  $region29: #{triconv_forward.1} parent=0 // pred_fallthru
    _
  %p26 = scmp.eq.s32.totalorder 0, 0
  // Predicated region
  $region30: #{triconv_forward.1} parent=0 // pred_check
    %p27 = pneg %p26
  $region31: #{triconv_forward.1} parent=0 // pred_check_branch
    %29 = sbr.rel (%p27) target = $region33
  $region32: #{triconv_forward.1} parent=0 // pred_region
    %30 = vst [vmem:[%s7] sm:$0xff] 0.0
    %31 = vst [vmem:[%s7 + $0x8] sm:$0xff] 0.0
    %32 = vst [vmem:[%s7 + $0x10] sm:$0xff] 0.0
    %33 = vst [vmem:[%s7 + $0x18] sm:$0xff] 0.0
    %34 = vst [vmem:[%s7 + $0x20] sm:$0xff] 0.0
    %35 = vst [vmem:[%s7 + $0x28] sm:$0xff] 0.0
    %36 = vst [vmem:[%s7 + $0x30] sm:$0xff] 0.0
    %37 = vst [vmem:[%s7 + $0x38] sm:$0xff] 0.0
  $region33: #{triconv_forward.1} parent=0 // pred_fallthru
    _
  %v38 = vld [vmem:[%s0] sm:$0xff]
  %v39 = vld [vmem:[%s0 + $0x8] sm:$0xff]
  %v40 = vld [vmem:[%s0 + $0x10] sm:$0xff]
  %v41 = vld [vmem:[%s0 + $0x18] sm:$0xff]
  %v42 = vld [vmem:[%s0 + $0x20] sm:$0xff]
  %v43 = vld [vmem:[%s0 + $0x28] sm:$0xff]
  %v44 = vld [vmem:[%s0 + $0x30] sm:$0xff]
  %v45 = vld [vmem:[%s0 + $0x38] sm:$0xff]
  %v46 = vld [vmem:[%s1] sm:$0xff]
  %v47 = vld [vmem:[%s1 + $0x8] sm:$0xff]
  %v48 = vld [vmem:[%s1 + $0x10] sm:$0xff]
  %v49 = vld [vmem:[%s1 + $0x18] sm:$0xff]
  %v50 = vld [vmem:[%s1 + $0x20] sm:$0xff]
  %v51 = vld [vmem:[%s1 + $0x28] sm:$0xff]
  %v52 = vld [vmem:[%s1 + $0x30] sm:$0xff]
  %v53 = vld [vmem:[%s1 + $0x38] sm:$0xff]
  %v54 = vld [vmem:[%s1 + $0x40] sm:$0xff]
  %v55 = vld [vmem:[%s1 + $0x48] sm:$0xff]
  %v56 = vld [vmem:[%s1 + $0x50] sm:$0xff]
  %v57 = vld [vmem:[%s1 + $0x58] sm:$0xff]
  %v58 = vld [vmem:[%s1 + $0x60] sm:$0xff]
  %v59 = vld [vmem:[%s1 + $0x68] sm:$0xff]
  %v60 = vld [vmem:[%s1 + $0x70] sm:$0xff]
  %v61 = vld [vmem:[%s1 + $0x78] sm:$0xff]
  %v62 = vld [vmem:[%s2] sm:$0xff]
  %v63 = vld [vmem:[%s2 + $0x8] sm:$0xff]
  %v64 = vld [vmem:[%s2 + $0x10] sm:$0xff]
  %v65 = vld [vmem:[%s2 + $0x18] sm:$0xff]
  %v66 = vld [vmem:[%s2 + $0x20] sm:$0xff]
  %v67 = vld [vmem:[%s2 + $0x28] sm:$0xff]
  %v68 = vld [vmem:[%s2 + $0x30] sm:$0xff]
  %v69 = vld [vmem:[%s2 + $0x38] sm:$0xff]
  %v70 = vld [vmem:[%s2 + $0x40] sm:$0xff]
  %v71 = vld [vmem:[%s2 + $0x48] sm:$0xff]
  %v72 = vld [vmem:[%s2 + $0x50] sm:$0xff]
  %v73 = vld [vmem:[%s2 + $0x58] sm:$0xff]
  %v74 = vld [vmem:[%s2 + $0x60] sm:$0xff]
  %v75 = vld [vmem:[%s2 + $0x68] sm:$0xff]
  %v76 = vld [vmem:[%s2 + $0x70] sm:$0xff]
  %v77 = vld [vmem:[%s2 + $0x78] sm:$0xff]
  %v78 = vlaneseq
  %v79 = vand.u32 %v78, 127
  %80 = vset.pattern.permute.xlu0 0
  %81 = vperm.xlu0 %80, %v46
  %v82 = vpop.permute.xlu0 %81
  %83 = vset.pattern.permute.xlu0 0
  %84 = vperm.xlu0 %83, %v47
  %v85 = vpop.permute.xlu0 %84
  %86 = vset.pattern.permute.xlu0 0
  %87 = vperm.xlu0 %86, %v48
  %v88 = vpop.permute.xlu0 %87
  %89 = vset.pattern.permute.xlu0 0
  %90 = vperm.xlu0 %89, %v49
  %v91 = vpop.permute.xlu0 %90
  %92 = vset.pattern.permute.xlu0 0
  %93 = vperm.xlu0 %92, %v50
  %v94 = vpop.permute.xlu0 %93
  %95 = vset.pattern.permute.xlu0 0
  %96 = vperm.xlu0 %95, %v51
  %v97 = vpop.permute.xlu0 %96
  %98 = vset.pattern.permute.xlu0 0
  %99 = vperm.xlu0 %98, %v52
  %v100 = vpop.permute.xlu0 %99
  %101 = vset.pattern.permute.xlu0 0
  %102 = vperm.xlu0 %101, %v53
  %v103 = vpop.permute.xlu0 %102
  %104 = vset.pattern.permute.xlu0 0
  %105 = vperm.xlu0 %104, %v54
  %v106 = vpop.permute.xlu0 %105
  %107 = vset.pattern.permute.xlu0 0
  %108 = vperm.xlu0 %107, %v55
  %v109 = vpop.permute.xlu0 %108
  %110 = vset.pattern.permute.xlu0 0
  %111 = vperm.xlu0 %110, %v56
  %v112 = vpop.permute.xlu0 %111
  %113 = vset.pattern.permute.xlu0 0
  %114 = vperm.xlu0 %113, %v57
  %v115 = vpop.permute.xlu0 %114
  %116 = vset.pattern.permute.xlu0 0
  %117 = vperm.xlu0 %116, %v58
  %v118 = vpop.permute.xlu0 %117
  %119 = vset.pattern.permute.xlu0 0
  %120 = vperm.xlu0 %119, %v59
  %v121 = vpop.permute.xlu0 %120
  %122 = vset.pattern.permute.xlu0 0
  %123 = vperm.xlu0 %122, %v60
  %v124 = vpop.permute.xlu0 %123
  %125 = vset.pattern.permute.xlu0 0
  %126 = vperm.xlu0 %125, %v61
  %v127 = vpop.permute.xlu0 %126
  %vm128 = vcmp.eq.s32.totalorder %v82, %v79
  %vm129 = vcmp.eq.s32.totalorder %v85, %v79
  %vm130 = vcmp.eq.s32.totalorder %v88, %v79
  %vm131 = vcmp.eq.s32.totalorder %v91, %v79
  %vm132 = vcmp.eq.s32.totalorder %v94, %v79
  %vm133 = vcmp.eq.s32.totalorder %v97, %v79
  %vm134 = vcmp.eq.s32.totalorder %v100, %v79
  %vm135 = vcmp.eq.s32.totalorder %v103, %v79
  %vm136 = vcmp.eq.s32.totalorder %v106, %v79
  %vm137 = vcmp.eq.s32.totalorder %v109, %v79
  %vm138 = vcmp.eq.s32.totalorder %v112, %v79
  %vm139 = vcmp.eq.s32.totalorder %v115, %v79
  %vm140 = vcmp.eq.s32.totalorder %v118, %v79
  %vm141 = vcmp.eq.s32.totalorder %v121, %v79
  %vm142 = vcmp.eq.s32.totalorder %v124, %v79
  %vm143 = vcmp.eq.s32.totalorder %v127, %v79
  %v144 = vsel %vm128, 1, 0
  %v145 = vsel %vm129, 1, 0
  %v146 = vsel %vm130, 1, 0
  %v147 = vsel %vm131, 1, 0
  %v148 = vsel %vm132, 1, 0
  %v149 = vsel %vm133, 1, 0
  %v150 = vsel %vm134, 1, 0
  %v151 = vsel %vm135, 1, 0
  %v152 = vsel %vm136, 1, 0
  %v153 = vsel %vm137, 1, 0
  %v154 = vsel %vm138, 1, 0
  %v155 = vsel %vm139, 1, 0
  %v156 = vsel %vm140, 1, 0
  %v157 = vsel %vm141, 1, 0
  %v158 = vsel %vm142, 1, 0
  %v159 = vsel %vm143, 1, 0
  %v160 = vcvt.s32.f32 %v144
  %v161 = vcvt.s32.f32 %v145
  %v162 = vcvt.s32.f32 %v146
  %v163 = vcvt.s32.f32 %v147
  %v164 = vcvt.s32.f32 %v148
  %v165 = vcvt.s32.f32 %v149
  %v166 = vcvt.s32.f32 %v150
  %v167 = vcvt.s32.f32 %v151
  %v168 = vcvt.s32.f32 %v152
  %v169 = vcvt.s32.f32 %v153
  %v170 = vcvt.s32.f32 %v154
  %v171 = vcvt.s32.f32 %v155
  %v172 = vcvt.s32.f32 %v156
  %v173 = vcvt.s32.f32 %v157
  %v174 = vcvt.s32.f32 %v158
  %v175 = vcvt.s32.f32 %v159
  %176 = vset.pattern.permute.xlu0 0
  %177 = vperm.xlu0 %176, %v62
  %v178 = vpop.permute.xlu0 %177
  %179 = vset.pattern.permute.xlu0 0
  %180 = vperm.xlu0 %179, %v63
  %v181 = vpop.permute.xlu0 %180
  %182 = vset.pattern.permute.xlu0 0
  %183 = vperm.xlu0 %182, %v64
  %v184 = vpop.permute.xlu0 %183
  %185 = vset.pattern.permute.xlu0 0
  %186 = vperm.xlu0 %185, %v65
  %v187 = vpop.permute.xlu0 %186
  %188 = vset.pattern.permute.xlu0 0
  %189 = vperm.xlu0 %188, %v66
  %v190 = vpop.permute.xlu0 %189
  %191 = vset.pattern.permute.xlu0 0
  %192 = vperm.xlu0 %191, %v67
  %v193 = vpop.permute.xlu0 %192
  %194 = vset.pattern.permute.xlu0 0
  %195 = vperm.xlu0 %194, %v68
  %v196 = vpop.permute.xlu0 %195
  %197 = vset.pattern.permute.xlu0 0
  %198 = vperm.xlu0 %197, %v69
  %v199 = vpop.permute.xlu0 %198
  %200 = vset.pattern.permute.xlu0 0
  %201 = vperm.xlu0 %200, %v70
  %v202 = vpop.permute.xlu0 %201
  %203 = vset.pattern.permute.xlu0 0
  %204 = vperm.xlu0 %203, %v71
  %v205 = vpop.permute.xlu0 %204
  %206 = vset.pattern.permute.xlu0 0
  %207 = vperm.xlu0 %206, %v72
  %v208 = vpop.permute.xlu0 %207
  %209 = vset.pattern.permute.xlu0 0
  %210 = vperm.xlu0 %209, %v73
  %v211 = vpop.permute.xlu0 %210
  %212 = vset.pattern.permute.xlu0 0
  %213 = vperm.xlu0 %212, %v74
  %v214 = vpop.permute.xlu0 %213
  %215 = vset.pattern.permute.xlu0 0
  %216 = vperm.xlu0 %215, %v75
  %v217 = vpop.permute.xlu0 %216
  %218 = vset.pattern.permute.xlu0 0
  %219 = vperm.xlu0 %218, %v76
  %v220 = vpop.permute.xlu0 %219
  %221 = vset.pattern.permute.xlu0 0
  %222 = vperm.xlu0 %221, %v77
  %v223 = vpop.permute.xlu0 %222
  %vm224 = vcmp.eq.s32.totalorder %v178, %v79
  %vm225 = vcmp.eq.s32.totalorder %v181, %v79
  %vm226 = vcmp.eq.s32.totalorder %v184, %v79
  %vm227 = vcmp.eq.s32.totalorder %v187, %v79
  %vm228 = vcmp.eq.s32.totalorder %v190, %v79
  %vm229 = vcmp.eq.s32.totalorder %v193, %v79
  %vm230 = vcmp.eq.s32.totalorder %v196, %v79
  %vm231 = vcmp.eq.s32.totalorder %v199, %v79
  %vm232 = vcmp.eq.s32.totalorder %v202, %v79
  %vm233 = vcmp.eq.s32.totalorder %v205, %v79
  %vm234 = vcmp.eq.s32.totalorder %v208, %v79
  %vm235 = vcmp.eq.s32.totalorder %v211, %v79
  %vm236 = vcmp.eq.s32.totalorder %v214, %v79
  %vm237 = vcmp.eq.s32.totalorder %v217, %v79
  %vm238 = vcmp.eq.s32.totalorder %v220, %v79
  %vm239 = vcmp.eq.s32.totalorder %v223, %v79
  %v240 = vsel %vm224, 1, 0
  %v241 = vsel %vm225, 1, 0
  %v242 = vsel %vm226, 1, 0
  %v243 = vsel %vm227, 1, 0
  %v244 = vsel %vm228, 1, 0
  %v245 = vsel %vm229, 1, 0
  %v246 = vsel %vm230, 1, 0
  %v247 = vsel %vm231, 1, 0
  %v248 = vsel %vm232, 1, 0
  %v249 = vsel %vm233, 1, 0
  %v250 = vsel %vm234, 1, 0
  %v251 = vsel %vm235, 1, 0
  %v252 = vsel %vm236, 1, 0
  %v253 = vsel %vm237, 1, 0
  %v254 = vsel %vm238, 1, 0
  %v255 = vsel %vm239, 1, 0
  %v256 = vcvt.s32.f32 %v240
  %v257 = vcvt.s32.f32 %v241
  %v258 = vcvt.s32.f32 %v242
  %v259 = vcvt.s32.f32 %v243
  %v260 = vcvt.s32.f32 %v244
  %v261 = vcvt.s32.f32 %v245
  %v262 = vcvt.s32.f32 %v246
  %v263 = vcvt.s32.f32 %v247
  %v264 = vcvt.s32.f32 %v248
  %v265 = vcvt.s32.f32 %v249
  %v266 = vcvt.s32.f32 %v250
  %v267 = vcvt.s32.f32 %v251
  %v268 = vcvt.s32.f32 %v252
  %v269 = vcvt.s32.f32 %v253
  %v270 = vcvt.s32.f32 %v254
  %v271 = vcvt.s32.f32 %v255
  %v272 = vsub.f32 %v160, %v256
  %v273 = vsub.f32 %v161, %v257
  %v274 = vsub.f32 %v162, %v258
  %v275 = vsub.f32 %v163, %v259
  %v276 = vsub.f32 %v164, %v260
  %v277 = vsub.f32 %v165, %v261
  %v278 = vsub.f32 %v166, %v262
  %v279 = vsub.f32 %v167, %v263
  %v280 = vsub.f32 %v168, %v264
  %v281 = vsub.f32 %v169, %v265
  %v282 = vsub.f32 %v170, %v266
  %v283 = vsub.f32 %v171, %v267
  %v284 = vsub.f32 %v172, %v268
  %v285 = vsub.f32 %v173, %v269
  %v286 = vsub.f32 %v174, %v270
  %v287 = vsub.f32 %v175, %v271
  %vm288 = vcmask 523264
  %v290 = vsel %vm288, %v272, 0
  %v293 = vsel %vm288, %v273, 0
  %v296 = vsel %vm288, %v274, 0
  %v299 = vsel %vm288, %v275, 0
  %v302 = vsel %vm288, %v276, 0
  %v305 = vsel %vm288, %v277, 0
  %v308 = vsel %vm288, %v278, 0
  %v311 = vsel %vm288, %v279, 0
  %v314 = vsel %vm288, %v280, 0
  %v317 = vsel %vm288, %v281, 0
  %v320 = vsel %vm288, %v282, 0
  %v323 = vsel %vm288, %v283, 0
  %v326 = vsel %vm288, %v284, 0
  %v329 = vsel %vm288, %v285, 0
  %v332 = vsel %vm288, %v286, 0
  %v335 = vsel %vm288, %v287, 0
  %337 = vmatprep.subr.mxu0 0.0
  %338 = vmatpush1.msra.mxu0 0.0
  %339 = vmatprep.subr.mxu0 0.0
  %340 = vmatpush1.msra.mxu0 0.0
  %341 = vmatprep.subr.mxu0 0.0
  %342 = vmatpush1.msra.mxu0 0.0
  %343 = vmatprep.subr.mxu0 0.0
  %344 = vmatpush1.msra.mxu0 0.0
  %345 = vmatprep.subr.mxu0 0.0
  %346 = vmatpush1.msra.mxu0 0.0
  %347 = vmatprep.subr.mxu0 0.0
  %348 = vmatpush1.msra.mxu0 0.0
  %349 = vmatprep.subr.mxu0 0.0
  %350 = vmatpush1.msra.mxu0 0.0
  %351 = vmatprep.subr.mxu0 0.0
  %352 = vmatpush1.msra.mxu0 0.0
  %353 = vmatprep.subr.mxu0 0.0
  %354 = vmatpush1.msra.mxu0 %v45
  %355 = vmatprep.subr.mxu0 0.0
  %356 = vmatpush1.msra.mxu0 %v44
  %357 = vmatprep.subr.mxu0 0.0
  %358 = vmatpush1.msra.mxu0 %v43
  %359 = vmatprep.subr.mxu0 0.0
  %360 = vmatpush1.msra.mxu0 %v42
  %361 = vmatprep.subr.mxu0 0.0
  %362 = vmatpush1.msra.mxu0 %v41
  %363 = vmatprep.subr.mxu0 0.0
  %364 = vmatpush1.msra.mxu0 %v40
  %365 = vmatprep.subr.mxu0 0.0
  %366 = vmatpush1.msra.mxu0 %v39
  %367 = vmatprep.subr.mxu0 0.0
  %368 = vmatpush1.msra.mxu0 %v38
  %369 = vmatprep.subr.mxu0 0.0
  %370 = vmatpush2.msra.mxu0 0.0
  %371 = vmatprep.subr.mxu0 0.0
  %372 = vmatpush2.msra.mxu0 0.0
  %373 = vmatprep.subr.mxu0 0.0
  %374 = vmatpush2.msra.mxu0 0.0
  %375 = vmatprep.subr.mxu0 0.0
  %376 = vmatpush2.msra.mxu0 0.0
  %377 = vmatprep.subr.mxu0 0.0
  %378 = vmatpush2.msra.mxu0 0.0
  %379 = vmatprep.subr.mxu0 0.0
  %380 = vmatpush2.msra.mxu0 0.0
  %381 = vmatprep.subr.mxu0 0.0
  %382 = vmatpush2.msra.mxu0 0.0
  %383 = vmatprep.subr.mxu0 0.0
  %384 = vmatpush2.msra.mxu0 0.0
  %385 = vmatprep.subr.mxu0 0.0
  %386 = vmatpush2.msra.mxu0 0.0
  %387 = vmatprep.subr.mxu0 0.0
  %388 = vmatpush2.msra.mxu0 0.0
  %389 = vmatprep.subr.mxu0 0.0
  %390 = vmatpush2.msra.mxu0 0.0
  %391 = vmatprep.subr.mxu0 0.0
  %392 = vmatpush2.msra.mxu0 0.0
  %393 = vmatprep.subr.mxu0 0.0
  %394 = vmatpush2.msra.mxu0 0.0
  %395 = vmatprep.subr.mxu0 0.0
  %396 = vmatpush2.msra.mxu0 0.0
  %397 = vmatprep.subr.mxu0 0.0
  %398 = vmatpush2.msra.mxu0 0.0
  %399 = vmatprep.subr.mxu0 0.0
  %400 = vmatpush2.msra.mxu0 0.0
  %401 = vmatprep.mubr.f32.mxu0 0.0
  %402 = vmatmul.mubr.f32.gmra.mxu0 %v290
  %v403 = vpop.f32.mrf.mxu0
  %v404 = vadd.f32 0.0, %v403
  %v405 = vpop.f32.mrf.mxu0
  %406 = vmatprep.mubr.f32.mxu0 0.0
  %407 = vmatmul.mubr.f32.gmra.mxu0 %v293
  %v408 = vpop.f32.mrf.mxu0
  %v409 = vadd.f32 0.0, %v408
  %v410 = vpop.f32.mrf.mxu0
  %411 = vmatprep.mubr.f32.mxu0 0.0
  %412 = vmatmul.mubr.f32.gmra.mxu0 %v296
  %v413 = vpop.f32.mrf.mxu0
  %v414 = vadd.f32 0.0, %v413
  %v415 = vpop.f32.mrf.mxu0
  %416 = vmatprep.mubr.f32.mxu0 0.0
  %417 = vmatmul.mubr.f32.gmra.mxu0 %v299
  %v418 = vpop.f32.mrf.mxu0
  %v419 = vadd.f32 0.0, %v418
  %v420 = vpop.f32.mrf.mxu0
  %421 = vmatprep.mubr.f32.mxu0 0.0
  %422 = vmatmul.mubr.f32.gmra.mxu0 %v302
  %v423 = vpop.f32.mrf.mxu0
  %v424 = vadd.f32 0.0, %v423
  %v425 = vpop.f32.mrf.mxu0
  %426 = vmatprep.mubr.f32.mxu0 0.0
  %427 = vmatmul.mubr.f32.gmra.mxu0 %v305
  %v428 = vpop.f32.mrf.mxu0
  %v429 = vadd.f32 0.0, %v428
  %v430 = vpop.f32.mrf.mxu0
  %431 = vmatprep.mubr.f32.mxu0 0.0
  %432 = vmatmul.mubr.f32.gmra.mxu0 %v308
  %v433 = vpop.f32.mrf.mxu0
  %v434 = vadd.f32 0.0, %v433
  %v435 = vpop.f32.mrf.mxu0
  %436 = vmatprep.mubr.f32.mxu0 0.0
  %437 = vmatmul.mubr.f32.gmra.mxu0 %v311
  %v438 = vpop.f32.mrf.mxu0
  %v439 = vadd.f32 0.0, %v438
  %v440 = vpop.f32.mrf.mxu0
  %441 = vmatprep.mubr.f32.mxu0 0.0
  %442 = vmatmul.mubr.f32.gmra.mxu0 %v314
  %v443 = vpop.f32.mrf.mxu0
  %v444 = vadd.f32 0.0, %v443
  %v445 = vpop.f32.mrf.mxu0
  %446 = vmatprep.mubr.f32.mxu0 0.0
  %447 = vmatmul.mubr.f32.gmra.mxu0 %v317
  %v448 = vpop.f32.mrf.mxu0
  %v449 = vadd.f32 0.0, %v448
  %v450 = vpop.f32.mrf.mxu0
  %451 = vmatprep.mubr.f32.mxu0 0.0
  %452 = vmatmul.mubr.f32.gmra.mxu0 %v320
  %v453 = vpop.f32.mrf.mxu0
  %v454 = vadd.f32 0.0, %v453
  %v455 = vpop.f32.mrf.mxu0
  %456 = vmatprep.mubr.f32.mxu0 0.0
  %457 = vmatmul.mubr.f32.gmra.mxu0 %v323
  %v458 = vpop.f32.mrf.mxu0
  %v459 = vadd.f32 0.0, %v458
  %v460 = vpop.f32.mrf.mxu0
  %461 = vmatprep.mubr.f32.mxu0 0.0
  %462 = vmatmul.mubr.f32.gmra.mxu0 %v326
  %v463 = vpop.f32.mrf.mxu0
  %v464 = vadd.f32 0.0, %v463
  %v465 = vpop.f32.mrf.mxu0
  %466 = vmatprep.mubr.f32.mxu0 0.0
  %467 = vmatmul.mubr.f32.gmra.mxu0 %v329
  %v468 = vpop.f32.mrf.mxu0
  %v469 = vadd.f32 0.0, %v468
  %v470 = vpop.f32.mrf.mxu0
  %471 = vmatprep.mubr.f32.mxu0 0.0
  %472 = vmatmul.mubr.f32.gmra.mxu0 %v332
  %v473 = vpop.f32.mrf.mxu0
  %v474 = vadd.f32 0.0, %v473
  %v475 = vpop.f32.mrf.mxu0
  %476 = vmatprep.mubr.f32.mxu0 0.0
  %477 = vmatmul.mubr.f32.gmra.mxu0 %v335
  %v478 = vpop.f32.mrf.mxu0
  %v479 = vadd.f32 0.0, %v478
  %v480 = vpop.f32.mrf.mxu0
  %481 = vdwg.mxu0
  %v482 = vld [vmem:[%s3] sm:$0xff]
  %v483 = vld [vmem:[%s3 + $0x8] sm:$0xff]
  %v484 = vld [vmem:[%s3 + $0x10] sm:$0xff]
  %v485 = vld [vmem:[%s3 + $0x18] sm:$0xff]
  %v486 = vld [vmem:[%s3 + $0x20] sm:$0xff]
  %v487 = vld [vmem:[%s3 + $0x28] sm:$0xff]
  %v488 = vld [vmem:[%s3 + $0x30] sm:$0xff]
  %v489 = vld [vmem:[%s3 + $0x38] sm:$0xff]
  %v490 = vld [vmem:[%s3 + $0x40] sm:$0xff]
  %v491 = vld [vmem:[%s3 + $0x48] sm:$0xff]
  %v492 = vld [vmem:[%s3 + $0x50] sm:$0xff]
  %v493 = vld [vmem:[%s3 + $0x58] sm:$0xff]
  %v494 = vld [vmem:[%s3 + $0x60] sm:$0xff]
  %v495 = vld [vmem:[%s3 + $0x68] sm:$0xff]
  %v496 = vld [vmem:[%s3 + $0x70] sm:$0xff]
  %v497 = vld [vmem:[%s3 + $0x78] sm:$0xff]
  %v498 = vld [vmem:[%s4] sm:$0x1]
  %v500 = vlaneseq
  %v501 = vshrl.u32 %v500, 7
  %v502 = vsub.s32 0, %v501
  %v503 = vrot.slane %v498, %v502
  %505 = vmatprep.subr.mxu0 0.0
  %506 = vmatpush1.msra.mxu0 %v497
  %507 = vmatprep.subr.mxu0 0.0
  %508 = vmatpush1.msra.mxu0 %v496
  %509 = vmatprep.subr.mxu0 0.0
  %510 = vmatpush1.msra.mxu0 %v495
  %511 = vmatprep.subr.mxu0 0.0
  %512 = vmatpush1.msra.mxu0 %v494
  %513 = vmatprep.subr.mxu0 0.0
  %514 = vmatpush1.msra.mxu0 %v493
  %515 = vmatprep.subr.mxu0 0.0
  %516 = vmatpush1.msra.mxu0 %v492
  %517 = vmatprep.subr.mxu0 0.0
  %518 = vmatpush1.msra.mxu0 %v491
  %519 = vmatprep.subr.mxu0 0.0
  %520 = vmatpush1.msra.mxu0 %v490
  %521 = vmatprep.subr.mxu0 0.0
  %522 = vmatpush1.msra.mxu0 %v489
  %523 = vmatprep.subr.mxu0 0.0
  %524 = vmatpush1.msra.mxu0 %v488
  %525 = vmatprep.subr.mxu0 0.0
  %526 = vmatpush1.msra.mxu0 %v487
  %527 = vmatprep.subr.mxu0 0.0
  %528 = vmatpush1.msra.mxu0 %v486
  %529 = vmatprep.subr.mxu0 0.0
  %530 = vmatpush1.msra.mxu0 %v485
  %531 = vmatprep.subr.mxu0 0.0
  %532 = vmatpush1.msra.mxu0 %v484
  %533 = vmatprep.subr.mxu0 0.0
  %534 = vmatpush1.msra.mxu0 %v483
  %535 = vmatprep.subr.mxu0 0.0
  %536 = vmatpush1.msra.mxu0 %v482
  %537 = vmatprep.subr.mxu0 0.0
  %538 = vmatpush2.msra.mxu0 0.0
  %539 = vmatprep.subr.mxu0 0.0
  %540 = vmatpush2.msra.mxu0 0.0
  %541 = vmatprep.subr.mxu0 0.0
  %542 = vmatpush2.msra.mxu0 0.0
  %543 = vmatprep.subr.mxu0 0.0
  %544 = vmatpush2.msra.mxu0 0.0
  %545 = vmatprep.subr.mxu0 0.0
  %546 = vmatpush2.msra.mxu0 0.0
  %547 = vmatprep.subr.mxu0 0.0
  %548 = vmatpush2.msra.mxu0 0.0
  %549 = vmatprep.subr.mxu0 0.0
  %550 = vmatpush2.msra.mxu0 0.0
  %551 = vmatprep.subr.mxu0 0.0
  %552 = vmatpush2.msra.mxu0 0.0
  %553 = vmatprep.subr.mxu0 0.0
  %554 = vmatpush2.msra.mxu0 0.0
  %555 = vmatprep.subr.mxu0 0.0
  %556 = vmatpush2.msra.mxu0 0.0
  %557 = vmatprep.subr.mxu0 0.0
  %558 = vmatpush2.msra.mxu0 0.0
  %559 = vmatprep.subr.mxu0 0.0
  %560 = vmatpush2.msra.mxu0 0.0
  %561 = vmatprep.subr.mxu0 0.0
  %562 = vmatpush2.msra.mxu0 0.0
  %563 = vmatprep.subr.mxu0 0.0
  %564 = vmatpush2.msra.mxu0 0.0
  %565 = vmatprep.subr.mxu0 0.0
  %566 = vmatpush2.msra.mxu0 0.0
  %567 = vmatprep.subr.mxu0 0.0
  %568 = vmatpush2.msra.mxu0 0.0
  %569 = vmatprep.mubr.f32.mxu0 0.0
  %570 = vmatmul.mubr.f32.gmra.mxu0 %v404
  %v571 = vpop.f32.mrf.mxu0
  %v572 = vadd.f32 %v503, %v571
  %v573 = vpop.f32.mrf.mxu0
  %574 = vmatprep.mubr.f32.mxu0 0.0
  %575 = vmatmul.mubr.f32.gmra.mxu0 %v409
  %v576 = vpop.f32.mrf.mxu0
  %v577 = vadd.f32 %v503, %v576
  %v578 = vpop.f32.mrf.mxu0
  %579 = vmatprep.mubr.f32.mxu0 0.0
  %580 = vmatmul.mubr.f32.gmra.mxu0 %v414
  %v581 = vpop.f32.mrf.mxu0
  %v582 = vadd.f32 %v503, %v581
  %v583 = vpop.f32.mrf.mxu0
  %584 = vmatprep.mubr.f32.mxu0 0.0
  %585 = vmatmul.mubr.f32.gmra.mxu0 %v419
  %v586 = vpop.f32.mrf.mxu0
  %v587 = vadd.f32 %v503, %v586
  %v588 = vpop.f32.mrf.mxu0
  %589 = vmatprep.mubr.f32.mxu0 0.0
  %590 = vmatmul.mubr.f32.gmra.mxu0 %v424
  %v591 = vpop.f32.mrf.mxu0
  %v592 = vadd.f32 %v503, %v591
  %v593 = vpop.f32.mrf.mxu0
  %594 = vmatprep.mubr.f32.mxu0 0.0
  %595 = vmatmul.mubr.f32.gmra.mxu0 %v429
  %v596 = vpop.f32.mrf.mxu0
  %v597 = vadd.f32 %v503, %v596
  %v598 = vpop.f32.mrf.mxu0
  %599 = vmatprep.mubr.f32.mxu0 0.0
  %600 = vmatmul.mubr.f32.gmra.mxu0 %v434
  %v601 = vpop.f32.mrf.mxu0
  %v602 = vadd.f32 %v503, %v601
  %v603 = vpop.f32.mrf.mxu0
  %604 = vmatprep.mubr.f32.mxu0 0.0
  %605 = vmatmul.mubr.f32.gmra.mxu0 %v439
  %v606 = vpop.f32.mrf.mxu0
  %v607 = vadd.f32 %v503, %v606
  %v608 = vpop.f32.mrf.mxu0
  %609 = vmatprep.mubr.f32.mxu0 0.0
  %610 = vmatmul.mubr.f32.gmra.mxu0 %v444
  %v611 = vpop.f32.mrf.mxu0
  %v612 = vadd.f32 %v503, %v611
  %v613 = vpop.f32.mrf.mxu0
  %614 = vmatprep.mubr.f32.mxu0 0.0
  %615 = vmatmul.mubr.f32.gmra.mxu0 %v449
  %v616 = vpop.f32.mrf.mxu0
  %v617 = vadd.f32 %v503, %v616
  %v618 = vpop.f32.mrf.mxu0
  %619 = vmatprep.mubr.f32.mxu0 0.0
  %620 = vmatmul.mubr.f32.gmra.mxu0 %v454
  %v621 = vpop.f32.mrf.mxu0
  %v622 = vadd.f32 %v503, %v621
  %v623 = vpop.f32.mrf.mxu0
  %624 = vmatprep.mubr.f32.mxu0 0.0
  %625 = vmatmul.mubr.f32.gmra.mxu0 %v459
  %v626 = vpop.f32.mrf.mxu0
  %v627 = vadd.f32 %v503, %v626
  %v628 = vpop.f32.mrf.mxu0
  %629 = vmatprep.mubr.f32.mxu0 0.0
  %630 = vmatmul.mubr.f32.gmra.mxu0 %v464
  %v631 = vpop.f32.mrf.mxu0
  %v632 = vadd.f32 %v503, %v631
  %v633 = vpop.f32.mrf.mxu0
  %634 = vmatprep.mubr.f32.mxu0 0.0
  %635 = vmatmul.mubr.f32.gmra.mxu0 %v469
  %v636 = vpop.f32.mrf.mxu0
  %v637 = vadd.f32 %v503, %v636
  %v638 = vpop.f32.mrf.mxu0
  %639 = vmatprep.mubr.f32.mxu0 0.0
  %640 = vmatmul.mubr.f32.gmra.mxu0 %v474
  %v641 = vpop.f32.mrf.mxu0
  %v642 = vadd.f32 %v503, %v641
  %v643 = vpop.f32.mrf.mxu0
  %644 = vmatprep.mubr.f32.mxu0 0.0
  %645 = vmatmul.mubr.f32.gmra.mxu0 %v479
  %v646 = vpop.f32.mrf.mxu0
  %v647 = vadd.f32 %v503, %v646
  %v648 = vpop.f32.mrf.mxu0
  %649 = vdwg.mxu0
  %v650 = vmax.f32 %v572, 0.0
  %v651 = vmax.f32 %v577, 0.0
  %v652 = vmax.f32 %v582, 0.0
  %v653 = vmax.f32 %v587, 0.0
  %v654 = vmax.f32 %v592, 0.0
  %v655 = vmax.f32 %v597, 0.0
  %v656 = vmax.f32 %v602, 0.0
  %v657 = vmax.f32 %v607, 0.0
  %v658 = vmax.f32 %v612, 0.0
  %v659 = vmax.f32 %v617, 0.0
  %v660 = vmax.f32 %v622, 0.0
  %v661 = vmax.f32 %v627, 0.0
  %v662 = vmax.f32 %v632, 0.0
  %v663 = vmax.f32 %v637, 0.0
  %v664 = vmax.f32 %v642, 0.0
  %v665 = vmax.f32 %v647, 0.0
  %v666 = vld [vmem:[%s5] sm:$0xff]
  %v667 = vld [vmem:[%s5 + $0x8] sm:$0xff]
  %v668 = vld [vmem:[%s5 + $0x10] sm:$0xff]
  %v669 = vld [vmem:[%s5 + $0x18] sm:$0xff]
  %v670 = vld [vmem:[%s5 + $0x20] sm:$0xff]
  %v671 = vld [vmem:[%s5 + $0x28] sm:$0xff]
  %v672 = vld [vmem:[%s5 + $0x30] sm:$0xff]
  %v673 = vld [vmem:[%s5 + $0x38] sm:$0xff]
  %v674 = vld [vmem:[%s5 + $0x40] sm:$0xff]
  %v675 = vld [vmem:[%s5 + $0x48] sm:$0xff]
  %v676 = vld [vmem:[%s5 + $0x50] sm:$0xff]
  %v677 = vld [vmem:[%s5 + $0x58] sm:$0xff]
  %v678 = vld [vmem:[%s5 + $0x60] sm:$0xff]
  %v679 = vld [vmem:[%s5 + $0x68] sm:$0xff]
  %v680 = vld [vmem:[%s5 + $0x70] sm:$0xff]
  %v681 = vld [vmem:[%s5 + $0x78] sm:$0xff]
  %v682 = vld [vmem:[%s6] sm:$0x1]
  %v684 = vlaneseq
  %v685 = vshrl.u32 %v684, 7
  %v686 = vsub.s32 0, %v685
  %v687 = vrot.slane %v682, %v686
  %689 = vmatprep.subr.mxu0 0.0
  %690 = vmatpush1.msra.mxu0 %v681
  %691 = vmatprep.subr.mxu0 0.0
  %692 = vmatpush1.msra.mxu0 %v680
  %693 = vmatprep.subr.mxu0 0.0
  %694 = vmatpush1.msra.mxu0 %v679
  %695 = vmatprep.subr.mxu0 0.0
  %696 = vmatpush1.msra.mxu0 %v678
  %697 = vmatprep.subr.mxu0 0.0
  %698 = vmatpush1.msra.mxu0 %v677
  %699 = vmatprep.subr.mxu0 0.0
  %700 = vmatpush1.msra.mxu0 %v676
  %701 = vmatprep.subr.mxu0 0.0
  %702 = vmatpush1.msra.mxu0 %v675
  %703 = vmatprep.subr.mxu0 0.0
  %704 = vmatpush1.msra.mxu0 %v674
  %705 = vmatprep.subr.mxu0 0.0
  %706 = vmatpush1.msra.mxu0 %v673
  %707 = vmatprep.subr.mxu0 0.0
  %708 = vmatpush1.msra.mxu0 %v672
  %709 = vmatprep.subr.mxu0 0.0
  %710 = vmatpush1.msra.mxu0 %v671
  %711 = vmatprep.subr.mxu0 0.0
  %712 = vmatpush1.msra.mxu0 %v670
  %713 = vmatprep.subr.mxu0 0.0
  %714 = vmatpush1.msra.mxu0 %v669
  %715 = vmatprep.subr.mxu0 0.0
  %716 = vmatpush1.msra.mxu0 %v668
  %717 = vmatprep.subr.mxu0 0.0
  %718 = vmatpush1.msra.mxu0 %v667
  %719 = vmatprep.subr.mxu0 0.0
  %720 = vmatpush1.msra.mxu0 %v666
  %721 = vmatprep.subr.mxu0 0.0
  %722 = vmatpush2.msra.mxu0 0.0
  %723 = vmatprep.subr.mxu0 0.0
  %724 = vmatpush2.msra.mxu0 0.0
  %725 = vmatprep.subr.mxu0 0.0
  %726 = vmatpush2.msra.mxu0 0.0
  %727 = vmatprep.subr.mxu0 0.0
  %728 = vmatpush2.msra.mxu0 0.0
  %729 = vmatprep.subr.mxu0 0.0
  %730 = vmatpush2.msra.mxu0 0.0
  %731 = vmatprep.subr.mxu0 0.0
  %732 = vmatpush2.msra.mxu0 0.0
  %733 = vmatprep.subr.mxu0 0.0
  %734 = vmatpush2.msra.mxu0 0.0
  %735 = vmatprep.subr.mxu0 0.0
  %736 = vmatpush2.msra.mxu0 0.0
  %737 = vmatprep.subr.mxu0 0.0
  %738 = vmatpush2.msra.mxu0 0.0
  %739 = vmatprep.subr.mxu0 0.0
  %740 = vmatpush2.msra.mxu0 0.0
  %741 = vmatprep.subr.mxu0 0.0
  %742 = vmatpush2.msra.mxu0 0.0
  %743 = vmatprep.subr.mxu0 0.0
  %744 = vmatpush2.msra.mxu0 0.0
  %745 = vmatprep.subr.mxu0 0.0
  %746 = vmatpush2.msra.mxu0 0.0
  %747 = vmatprep.subr.mxu0 0.0
  %748 = vmatpush2.msra.mxu0 0.0
  %749 = vmatprep.subr.mxu0 0.0
  %750 = vmatpush2.msra.mxu0 0.0
  %751 = vmatprep.subr.mxu0 0.0
  %752 = vmatpush2.msra.mxu0 0.0
  %753 = vmatprep.mubr.f32.mxu0 0.0
  %754 = vmatmul.mubr.f32.gmra.mxu0 %v650
  %v755 = vpop.f32.mrf.mxu0
  %v756 = vadd.f32 %v687, %v755
  %v757 = vpop.f32.mrf.mxu0
  %758 = vmatprep.mubr.f32.mxu0 0.0
  %759 = vmatmul.mubr.f32.gmra.mxu0 %v651
  %v760 = vpop.f32.mrf.mxu0
  %v761 = vadd.f32 %v687, %v760
  %v762 = vpop.f32.mrf.mxu0
  %763 = vmatprep.mubr.f32.mxu0 0.0
  %764 = vmatmul.mubr.f32.gmra.mxu0 %v652
  %v765 = vpop.f32.mrf.mxu0
  %v766 = vadd.f32 %v687, %v765
  %v767 = vpop.f32.mrf.mxu0
  %768 = vmatprep.mubr.f32.mxu0 0.0
  %769 = vmatmul.mubr.f32.gmra.mxu0 %v653
  %v770 = vpop.f32.mrf.mxu0
  %v771 = vadd.f32 %v687, %v770
  %v772 = vpop.f32.mrf.mxu0
  %773 = vmatprep.mubr.f32.mxu0 0.0
  %774 = vmatmul.mubr.f32.gmra.mxu0 %v654
  %v775 = vpop.f32.mrf.mxu0
  %v776 = vadd.f32 %v687, %v775
  %v777 = vpop.f32.mrf.mxu0
  %778 = vmatprep.mubr.f32.mxu0 0.0
  %779 = vmatmul.mubr.f32.gmra.mxu0 %v655
  %v780 = vpop.f32.mrf.mxu0
  %v781 = vadd.f32 %v687, %v780
  %v782 = vpop.f32.mrf.mxu0
  %783 = vmatprep.mubr.f32.mxu0 0.0
  %784 = vmatmul.mubr.f32.gmra.mxu0 %v656
  %v785 = vpop.f32.mrf.mxu0
  %v786 = vadd.f32 %v687, %v785
  %v787 = vpop.f32.mrf.mxu0
  %788 = vmatprep.mubr.f32.mxu0 0.0
  %789 = vmatmul.mubr.f32.gmra.mxu0 %v657
  %v790 = vpop.f32.mrf.mxu0
  %v791 = vadd.f32 %v687, %v790
  %v792 = vpop.f32.mrf.mxu0
  %793 = vmatprep.mubr.f32.mxu0 0.0
  %794 = vmatmul.mubr.f32.gmra.mxu0 %v658
  %v795 = vpop.f32.mrf.mxu0
  %v796 = vadd.f32 %v687, %v795
  %v797 = vpop.f32.mrf.mxu0
  %798 = vmatprep.mubr.f32.mxu0 0.0
  %799 = vmatmul.mubr.f32.gmra.mxu0 %v659
  %v800 = vpop.f32.mrf.mxu0
  %v801 = vadd.f32 %v687, %v800
  %v802 = vpop.f32.mrf.mxu0
  %803 = vmatprep.mubr.f32.mxu0 0.0
  %804 = vmatmul.mubr.f32.gmra.mxu0 %v660
  %v805 = vpop.f32.mrf.mxu0
  %v806 = vadd.f32 %v687, %v805
  %v807 = vpop.f32.mrf.mxu0
  %808 = vmatprep.mubr.f32.mxu0 0.0
  %809 = vmatmul.mubr.f32.gmra.mxu0 %v661
  %v810 = vpop.f32.mrf.mxu0
  %v811 = vadd.f32 %v687, %v810
  %v812 = vpop.f32.mrf.mxu0
  %813 = vmatprep.mubr.f32.mxu0 0.0
  %814 = vmatmul.mubr.f32.gmra.mxu0 %v662
  %v815 = vpop.f32.mrf.mxu0
  %v816 = vadd.f32 %v687, %v815
  %v817 = vpop.f32.mrf.mxu0
  %818 = vmatprep.mubr.f32.mxu0 0.0
  %819 = vmatmul.mubr.f32.gmra.mxu0 %v663
  %v820 = vpop.f32.mrf.mxu0
  %v821 = vadd.f32 %v687, %v820
  %v822 = vpop.f32.mrf.mxu0
  %823 = vmatprep.mubr.f32.mxu0 0.0
  %824 = vmatmul.mubr.f32.gmra.mxu0 %v664
  %v825 = vpop.f32.mrf.mxu0
  %v826 = vadd.f32 %v687, %v825
  %v827 = vpop.f32.mrf.mxu0
  %828 = vmatprep.mubr.f32.mxu0 0.0
  %829 = vmatmul.mubr.f32.gmra.mxu0 %v665
  %v830 = vpop.f32.mrf.mxu0
  %v831 = vadd.f32 %v687, %v830
  %v832 = vpop.f32.mrf.mxu0
  %833 = vdwg.mxu0
  %v834 = vld [vmem:[%s7] sm:$0xff]
  %v835 = vld [vmem:[%s7 + $0x8] sm:$0xff]
  %v836 = vld [vmem:[%s7 + $0x10] sm:$0xff]
  %v837 = vld [vmem:[%s7 + $0x18] sm:$0xff]
  %v838 = vld [vmem:[%s7 + $0x20] sm:$0xff]
  %v839 = vld [vmem:[%s7 + $0x28] sm:$0xff]
  %v840 = vld [vmem:[%s7 + $0x30] sm:$0xff]
  %v841 = vld [vmem:[%s7 + $0x38] sm:$0xff]
  %842 = vxpose.xlu0.b32.start [1/16] %v160, 128
  %843 = vxpose.xlu0.b32.cont [2/16] %v161, 128
  %844 = vxpose.xlu0.b32.cont [3/16] %v162, 128
  %845 = vxpose.xlu0.b32.cont [4/16] %v163, 128
  %846 = vxpose.xlu0.b32.cont [5/16] %v164, 128
  %847 = vxpose.xlu0.b32.cont [6/16] %v165, 128
  %848 = vxpose.xlu0.b32.cont [7/16] %v166, 128
  %849 = vxpose.xlu0.b32.cont [8/16] %v167, 128
  %850 = vxpose.xlu0.b32.cont [9/16] %v168, 128
  %851 = vxpose.xlu0.b32.cont [10/16] %v169, 128
  %852 = vxpose.xlu0.b32.cont [11/16] %v170, 128
  %853 = vxpose.xlu0.b32.cont [12/16] %v171, 128
  %854 = vxpose.xlu0.b32.cont [13/16] %v172, 128
  %855 = vxpose.xlu0.b32.cont [14/16] %v173, 128
  %856 = vxpose.xlu0.b32.cont [15/16] %v174, 128
  %857 = vxpose.xlu0.b32.end [16/16] %v175, 128
  %v858 = vpop.trf.xlu0
  %v859 = vpop.trf.xlu0
  %v860 = vpop.trf.xlu0
  %v861 = vpop.trf.xlu0
  %v862 = vpop.trf.xlu0
  %v863 = vpop.trf.xlu0
  %v864 = vpop.trf.xlu0
  %v865 = vpop.trf.xlu0
  %v866 = vpop.trf.xlu0
  %v867 = vpop.trf.xlu0
  %v868 = vpop.trf.xlu0
  %v869 = vpop.trf.xlu0
  %v870 = vpop.trf.xlu0
  %v871 = vpop.trf.xlu0
  %v872 = vpop.trf.xlu0
  %v873 = vpop.trf.xlu0
  %874 = vmatprep.subr.mxu0 0.0
  %875 = vmatpush1.msra.mxu0 %v831
  %876 = vmatprep.subr.mxu0 0.0
  %877 = vmatpush1.msra.mxu0 %v826
  %878 = vmatprep.subr.mxu0 0.0
  %879 = vmatpush1.msra.mxu0 %v821
  %880 = vmatprep.subr.mxu0 0.0
  %881 = vmatpush1.msra.mxu0 %v816
  %882 = vmatprep.subr.mxu0 0.0
  %883 = vmatpush1.msra.mxu0 %v811
  %884 = vmatprep.subr.mxu0 0.0
  %885 = vmatpush1.msra.mxu0 %v806
  %886 = vmatprep.subr.mxu0 0.0
  %887 = vmatpush1.msra.mxu0 %v801
  %888 = vmatprep.subr.mxu0 0.0
  %889 = vmatpush1.msra.mxu0 %v796
  %890 = vmatprep.subr.mxu0 0.0
  %891 = vmatpush1.msra.mxu0 %v791
  %892 = vmatprep.subr.mxu0 0.0
  %893 = vmatpush1.msra.mxu0 %v786
  %894 = vmatprep.subr.mxu0 0.0
  %895 = vmatpush1.msra.mxu0 %v781
  %896 = vmatprep.subr.mxu0 0.0
  %897 = vmatpush1.msra.mxu0 %v776
  %898 = vmatprep.subr.mxu0 0.0
  %899 = vmatpush1.msra.mxu0 %v771
  %900 = vmatprep.subr.mxu0 0.0
  %901 = vmatpush1.msra.mxu0 %v766
  %902 = vmatprep.subr.mxu0 0.0
  %903 = vmatpush1.msra.mxu0 %v761
  %904 = vmatprep.subr.mxu0 0.0
  %905 = vmatpush1.msra.mxu0 %v756
  %906 = vmatprep.subr.mxu0 0.0
  %907 = vmatpush2.msra.mxu0 0.0
  %908 = vmatprep.subr.mxu0 0.0
  %909 = vmatpush2.msra.mxu0 0.0
  %910 = vmatprep.subr.mxu0 0.0
  %911 = vmatpush2.msra.mxu0 0.0
  %912 = vmatprep.subr.mxu0 0.0
  %913 = vmatpush2.msra.mxu0 0.0
  %914 = vmatprep.subr.mxu0 0.0
  %915 = vmatpush2.msra.mxu0 0.0
  %916 = vmatprep.subr.mxu0 0.0
  %917 = vmatpush2.msra.mxu0 0.0
  %918 = vmatprep.subr.mxu0 0.0
  %919 = vmatpush2.msra.mxu0 0.0
  %920 = vmatprep.subr.mxu0 0.0
  %921 = vmatpush2.msra.mxu0 0.0
  %922 = vmatprep.subr.mxu0 0.0
  %923 = vmatpush2.msra.mxu0 0.0
  %924 = vmatprep.subr.mxu0 0.0
  %925 = vmatpush2.msra.mxu0 0.0
  %926 = vmatprep.subr.mxu0 0.0
  %927 = vmatpush2.msra.mxu0 0.0
  %928 = vmatprep.subr.mxu0 0.0
  %929 = vmatpush2.msra.mxu0 0.0
  %930 = vmatprep.subr.mxu0 0.0
  %931 = vmatpush2.msra.mxu0 0.0
  %932 = vmatprep.subr.mxu0 0.0
  %933 = vmatpush2.msra.mxu0 0.0
  %934 = vmatprep.subr.mxu0 0.0
  %935 = vmatpush2.msra.mxu0 0.0
  %936 = vmatprep.subr.mxu0 0.0
  %937 = vmatpush2.msra.mxu0 0.0
  %938 = vmatprep.mubr.f32.mxu0 0.0
  %939 = vmatmul.mubr.f32.gmra.mxu0 %v858
  %v940 = vpop.f32.mrf.mxu0
  %v941 = vadd.f32 0.0, %v940
  %v942 = vpop.f32.mrf.mxu0
  %943 = vmatprep.mubr.f32.mxu0 0.0
  %944 = vmatmul.mubr.f32.gmra.mxu0 %v859
  %v945 = vpop.f32.mrf.mxu0
  %v946 = vadd.f32 0.0, %v945
  %v947 = vpop.f32.mrf.mxu0
  %948 = vmatprep.mubr.f32.mxu0 0.0
  %949 = vmatmul.mubr.f32.gmra.mxu0 %v860
  %v950 = vpop.f32.mrf.mxu0
  %v951 = vadd.f32 0.0, %v950
  %v952 = vpop.f32.mrf.mxu0
  %953 = vmatprep.mubr.f32.mxu0 0.0
  %954 = vmatmul.mubr.f32.gmra.mxu0 %v861
  %v955 = vpop.f32.mrf.mxu0
  %v956 = vadd.f32 0.0, %v955
  %v957 = vpop.f32.mrf.mxu0
  %958 = vmatprep.mubr.f32.mxu0 0.0
  %959 = vmatmul.mubr.f32.gmra.mxu0 %v862
  %v960 = vpop.f32.mrf.mxu0
  %v961 = vadd.f32 0.0, %v960
  %v962 = vpop.f32.mrf.mxu0
  %963 = vmatprep.mubr.f32.mxu0 0.0
  %964 = vmatmul.mubr.f32.gmra.mxu0 %v863
  %v965 = vpop.f32.mrf.mxu0
  %v966 = vadd.f32 0.0, %v965
  %v967 = vpop.f32.mrf.mxu0
  %968 = vmatprep.mubr.f32.mxu0 0.0
  %969 = vmatmul.mubr.f32.gmra.mxu0 %v864
  %v970 = vpop.f32.mrf.mxu0
  %v971 = vadd.f32 0.0, %v970
  %v972 = vpop.f32.mrf.mxu0
  %973 = vmatprep.mubr.f32.mxu0 0.0
  %974 = vmatmul.mubr.f32.gmra.mxu0 %v865
  %v975 = vpop.f32.mrf.mxu0
  %v976 = vadd.f32 0.0, %v975
  %v977 = vpop.f32.mrf.mxu0
  %978 = vdwg.mxu0
  %v979 = vadd.f32 %v834, %v941
  %v980 = vadd.f32 %v835, %v946
  %v981 = vadd.f32 %v836, %v951
  %v982 = vadd.f32 %v837, %v956
  %v983 = vadd.f32 %v838, %v961
  %v984 = vadd.f32 %v839, %v966
  %v985 = vadd.f32 %v840, %v971
  %v986 = vadd.f32 %v841, %v976
  %987 = vst [vmem:[%s7] sm:$0xff] %v979
  %988 = vst [vmem:[%s7 + $0x8] sm:$0xff] %v980
  %989 = vst [vmem:[%s7 + $0x10] sm:$0xff] %v981
  %990 = vst [vmem:[%s7 + $0x18] sm:$0xff] %v982
  %991 = vst [vmem:[%s7 + $0x20] sm:$0xff] %v983
  %992 = vst [vmem:[%s7 + $0x28] sm:$0xff] %v984
  %993 = vst [vmem:[%s7 + $0x30] sm:$0xff] %v985
  %994 = vst [vmem:[%s7 + $0x38] sm:$0xff] %v986
  // Predicated region
  $region34: #{triconv_forward.1} parent=0 // pred_check
    _
  $region35: #{triconv_forward.1} parent=0 // pred_check_branch
    %996 = sbr.rel (0) target = $region37
  $region36: #{triconv_forward.1} parent=0 // pred_region
    _
  $region37: #{triconv_forward.1} parent=0 // pred_fallthru
    _
  // Predicated region
  $region38: #{triconv_forward.1} parent=0 // pred_check
    _
  $region39: #{triconv_forward.1} parent=0 // pred_check_branch
    %998 = sbr.rel (0) target = $region41
  $region40: #{triconv_forward.1} parent=0 // pred_region
    _
  $region41: #{triconv_forward.1} parent=0 // pred_fallthru
    _

</llo_original>
